<compile_context>
chip_gen: v7x
topology: tpu7x:2x2x1
jax: 0.10.0
libtpu: 0.0.40
codegen_flags: <defaults>
</compile_context>

<pallas_src>
import functools

import numpy as np
import jax
import jax.numpy as jnp
from jax.experimental import pallas as pl
from jax.experimental.pallas import tpu as pltpu


# ----------------------------------------------------------------------------- kernels


def _channel_attn_kernel(x_ref, w1_ref, w2_ref, o_ref, sum_ref, max_ref, *,
                         inv_hw, hw, chunk, mask_tail):
    # x_ref:  (1, C, CHUNK) VMEM, native dtype -- one spatial chunk of one batch element
    # w1_ref: (C_r, C) VMEM f32                -- fc1 weight (Conv2d(C, C_r, 1, bias=False))
    # w2_ref: (C, C_r) VMEM f32                -- fc2 weight (Conv2d(C_r, C, 1, bias=False))
    # o_ref:  (1, C, 1) VMEM f32
    s = pl.program_id(1)
    n_s = pl.num_programs(1)

    # Single VMEM read of the chunk feeds BOTH reductions; cast to f32 in vregs.
    xv = x_ref[0].astype(jnp.float32)                       # (C, CHUNK)
    if mask_tail:
        lane = jax.lax.broadcasted_iota(jnp.int32, xv.shape, 1)
        valid = (s * chunk + lane) < hw
        x_sum = jnp.where(valid, xv, 0.0)
        x_max = jnp.where(valid, xv, -jnp.inf)
    else:
        x_sum = xv
        x_max = xv
    psum = jnp.sum(x_sum, axis=-1, keepdims=True)           # (C, 1)
    pmax = jnp.max(x_max, axis=-1, keepdims=True)           # (C, 1)

    @pl.when(s == 0)
    def _init():
        sum_ref[...] = psum
        max_ref[...] = pmax

    @pl.when(s != 0)
    def _accum():
        sum_ref[...] = sum_ref[...] + psum
        max_ref[...] = jnp.maximum(max_ref[...], pmax)

    @pl.when(s == n_s - 1)
    def _finalize():
        avg = sum_ref[...] * inv_hw                          # (C, 1) == AdaptiveAvgPool2d(1)
        mx = max_ref[...]                                    # (C, 1) == AdaptiveMaxPool2d(1)
        pooled = jnp.concatenate([avg, mx], axis=-1)         # (C, 2)
        # ONE fc1 matmul for both pooled vectors, ReLU, column-sum, ONE fc2 matmul
        # (fc2 is linear: fc2(h_avg) + fc2(h_max) == fc2(h_avg + h_max)).
        h = jnp.maximum(
            jnp.dot(w1_ref[...], pooled, preferred_element_type=jnp.float32), 0.0)  # (C_r, 2)
        h_sum = jnp.sum(h, axis=-1, keepdims=True)           # (C_r, 1)
        out = jnp.dot(w2_ref[...], h_sum, preferred_element_type=jnp.float32)       # (C, 1)
        o_ref[0] = jax.nn.sigmoid(out)


def _partial_stats_kernel(x_ref, o_ref, sum_ref, max_ref, *, hw, chunk, s_per):
    # grid = (B, n_splits, s_per). Emits per-(batch, split) partial [sum | max] of shape
    # (C, 2); the tiny combine + MLP epilogue runs in the wrapper (split path only).
    p = pl.program_id(1)
    s = pl.program_id(2)
    n_s = pl.num_programs(2)

    xv = x_ref[0].astype(jnp.float32)                        # (C, CHUNK)
    lane = jax.lax.broadcasted_iota(jnp.int32, xv.shape, 1)
    start = (p * s_per + s) * chunk
    valid = (start + lane) < hw                              # also masks fully-OOB steps
    psum = jnp.sum(jnp.where(valid, xv, 0.0), axis=-1, keepdims=True)
    pmax = jnp.max(jnp.where(valid, xv, -jnp.inf), axis=-1, keepdims=True)

    @pl.when(s == 0)
    def _init():
        sum_ref[...] = psum
        max_ref[...] = pmax

    @pl.when(s != 0)
    def _accum():
        sum_ref[...] = sum_ref[...] + psum
        max_ref[...] = jnp.maximum(max_ref[...], pmax)

    @pl.when(s == n_s - 1)
    def _finalize():
        o_ref[0, 0] = jnp.concatenate([sum_ref[...], max_ref[...]], axis=-1)   # (C, 2)


# ----------------------------------------------------------------------------- wrapper


def _vmem_capacity_bytes():
    try:
        info = pltpu.get_tpu_info()
        cap = getattr(info, "vmem_capacity_bytes", None)
        if cap:
            return int(cap)
    except Exception:
        pass
    return 64 << 20   # conservative default (v7x per-core VMEM)


def _pick_chunk(hw, c, itemsize, vmem_cap):
    """Lane-aligned spatial chunk sized per generation's VMEM / HBM balance."""
    if hw <= 128:
        return hw                                   # single full-width block
    # ~8 MiB x-chunk on 64 MiB-VMEM parts (v7x), ~16 MiB on 128 MiB parts (v5e/v6e);
    # each chunk is double-buffered by the BlockSpec pipeline.
    target_bytes = (8 << 20) if vmem_cap <= (64 << 20) else (16 << 20)
    max_elems = max(128, (target_bytes // (itemsize * c)) // 128 * 128)
    hw_pad = pl.cdiv(hw, 128) * 128
    return int(min(hw_pad, max_elems))


def channel_attention(x, w1, w2, *, spatial_chunk=None, n_spatial_splits=None):
    """x: (B, C, H, W) any float dtype; w1: (C_r, C) fc1 weight; w2: (C, C_r) fc2 weight.

    Returns sigmoid(fc2(relu(fc1(avgpool(x)))) + fc2(relu(fc1(maxpool(x))))), shape
    (B, C, 1, 1), f32 (accumulation and epilogue are done in f32).
    """
    w1 = w1.astype(jnp.float32)
    w2 = w2.astype(jnp.float32)

    B, C, H, W = x.shape
    C_r = w1.shape[0]
    assert w1.shape == (C_r, C) and w2.shape == (C, C_r), (w1.shape, w2.shape)

    HW = H * W
    x_item = jnp.dtype(x.dtype).itemsize
    vmem_cap = _vmem_capacity_bytes()

    if spatial_chunk is None:
        chunk = _pick_chunk(HW, C, x_item, vmem_cap)
    else:
        chunk = int(spatial_chunk)
        if HW > 128:   # force lane alignment; the ragged tail is masked in-kernel
            chunk = int(min(pl.cdiv(chunk, 128) * 128, pl.cdiv(HW, 128) * 128))
        else:
            chunk = HW
    S_total = int(pl.cdiv(HW, chunk))
    mask_tail = (HW % chunk) != 0

    if n_spatial_splits is None:
        # With a single batch element, split the reduction so both v7x TCs stream HBM.
        n_splits = 2 if (B == 1 and S_total >= 2) else 1
    else:
        n_splits = max(1, min(int(n_spatial_splits), S_total))

    # Free HBM reshape: lane-dense (B, C, H*W), native dtype (no f32 upcast pass).
    x2 = x.reshape(B, C, HW)

    # Explicit VMEM budget from the actual resident set, clamped to device VMEM.
    c_pad = int(pl.cdiv(C, 8) * 8)
    resident = (2 * C * chunk * x_item              # x chunk, double-buffered
                + 4 * C_r * C * 4                   # w1 + w2 (double-buffered)
                + 2 * c_pad * 128 * 4               # sum/max scratch (lane padding)
                + c_pad * 128 * 4)                  # output block (padded)
    vmem_bytes = int(resident + (4 << 20))          # headroom for Mosaic internals
    vmem_bytes = int(min(max(vmem_bytes, 8 << 20), vmem_cap - (8 << 20)))

    if n_splits == 1:
        kernel = functools.partial(_channel_attn_kernel, inv_hw=1.0 / float(HW),
                                   hw=HW, chunk=chunk, mask_tail=mask_tail)
        out = pl.pallas_call(
            kernel,
            out_shape=jax.ShapeDtypeStruct((B, C, 1), jnp.float32),
            grid_spec=pltpu.PrefetchScalarGridSpec(
                num_scalar_prefetch=0,
                grid=(B, S_total),
                in_specs=[
                    pl.BlockSpec((1, C, chunk), lambda b, s: (b, 0, s)),   # x chunk
                    pl.BlockSpec((C_r, C), lambda b, s: (0, 0)),           # fc1 weight
                    pl.BlockSpec((C, C_r), lambda b, s: (0, 0)),           # fc2 weight
                ],
                out_specs=pl.BlockSpec((1, C, 1), lambda b, s: (b, 0, 0)),
                scratch_shapes=[
                    pltpu.VMEM((C, 1), jnp.float32),   # running sum (f32)
                    pltpu.VMEM((C, 1), jnp.float32),   # running max (f32)
                ],
            ),
            compiler_params=pltpu.CompilerParams(
                dimension_semantics=("parallel", "arbitrary"),
                vmem_limit_bytes=vmem_bytes,
            ),
        )(x2, w1, w2)
        return out.reshape(B, C, 1, 1)

    # ---- split path: independent partial sum/max per spatial split (megacore) ----
    s_per = int(pl.cdiv(S_total, n_splits))

    def x_index_map(b, p, s):
        # Clamp fully-out-of-range steps to the last real chunk; the kernel's lane
        # mask (based on the UNclamped offset) neutralizes their contribution.
        return (b, 0, jnp.minimum(p * s_per + s, S_total - 1))

    kernel = functools.partial(_partial_stats_kernel, hw=HW, chunk=chunk, s_per=s_per)
    partial = pl.pallas_call(
        kernel,
        out_shape=jax.ShapeDtypeStruct((B, n_splits, C, 2), jnp.float32),
        grid_spec=pltpu.PrefetchScalarGridSpec(
            num_scalar_prefetch=0,
            grid=(B, n_splits, s_per),
            in_specs=[pl.BlockSpec((1, C, chunk), x_index_map)],
            out_specs=pl.BlockSpec((1, 1, C, 2), lambda b, p, s: (b, p, 0, 0)),
            scratch_shapes=[
                pltpu.VMEM((C, 1), jnp.float32),
                pltpu.VMEM((C, 1), jnp.float32),
            ],
        ),
        compiler_params=pltpu.CompilerParams(
            dimension_semantics=("parallel", "parallel", "arbitrary"),
            vmem_limit_bytes=vmem_bytes,
        ),
    )(x2)

    # Tiny combine + MLP epilogue (B*C elements) in plain JAX.
    avg = jnp.sum(partial[..., 0], axis=1) * (1.0 / float(HW))   # (B, C)
    mx = jnp.max(partial[..., 1], axis=1)                        # (B, C)
    pooled = jnp.stack([avg, mx], axis=-1)                       # (B, C, 2)
    h = jnp.maximum(jnp.einsum("rc,bcp->brp", w1, pooled), 0.0)  # (B, C_r, 2)
    out = jnp.einsum("cr,br->bc", w2, jnp.sum(h, axis=-1))       # (B, C)
    return jax.nn.sigmoid(out).reshape(B, C, 1, 1)


# ----------------------------------------------------------------------------- reference


def _reference(x, w1, w2):
    """Pure-JAX reference matching the PyTorch ChannelAttention forward (in f32)."""
    x = x.astype(jnp.float32)
    avg = jnp.mean(x, axis=(2, 3))               # (B, C)
    mx = jnp.max(x, axis=(2, 3))                 # (B, C)

    def mlp(p):
        h = jnp.maximum(p @ w1.T, 0.0)           # fc1 + ReLU
        return h @ w2.T                          # fc2

    out = jax.nn.sigmoid(mlp(avg) + mlp(mx))     # (B, C)
    return out[:, :, None, None]                 # (B, C, 1, 1)


if __name__ == "__main__":
    # H=W=13 -> H*W=169: exercises the lane-padded / masked ragged-tail path.
    B, C, H, W = 2, 16, 13, 13
    ratio = 8
    C_r = C // ratio                             # fc1: Conv2d(16, 2, 1, bias=False)

    key = jax.random.PRNGKey(0)
    kx, k1, k2 = jax.random.split(key, 3)
    x = jax.random.normal(kx, (B, C, H, W), dtype=jnp.float32)
    w1 = 0.1 * jax.random.normal(k1, (C_r, C), dtype=jnp.float32)   # fc1 weight (O, I)
    w2 = 0.1 * jax.random.normal(k2, (C, C_r), dtype=jnp.float32)   # fc2 weight (O, I)

    # Fused single-kernel path; spatial_chunk=128 forces multi-step accumulation plus a
    # masked tail (169 = 128 + 41), exercising init / accumulate / finalize under pl.when.
    out = channel_attention(x, w1, w2, spatial_chunk=128)
    out = jax.block_until_ready(out)
    ref = jax.block_until_ready(_reference(x, w1, w2))
    assert out.shape == (B, C, 1, 1), out.shape
    np.testing.assert_allclose(np.asarray(out), np.asarray(ref), atol=1e-5, rtol=1e-5)

    # Split path: B=1 with bf16 streaming exercises native-dtype input + the megacore
    # spatial-split kernel (partial sum/max per split, combine + MLP in the wrapper).
    xb = x[:1].astype(jnp.bfloat16)
    out2 = channel_attention(xb, w1, w2, spatial_chunk=128, n_spatial_splits=2)
    out2 = jax.block_until_ready(out2)
    ref2 = jax.block_until_ready(_reference(xb, w1, w2))
    assert out2.shape == (1, C, 1, 1), out2.shape
    np.testing.assert_allclose(np.asarray(out2), np.asarray(ref2), atol=1e-4, rtol=1e-4)

    print("KERNEL_OK")
</pallas_src>

<mosaic_0001>
module attributes {stable_mosaic.version = 11 : i64} {
  func.func @_channel_attn_kernel(%arg0: i32, %arg1: i32, %arg2: memref<1x16x128xf32, #tpu.memory_space<vmem>>, %arg3: memref<2x16xf32, #tpu.memory_space<vmem>>, %arg4: memref<16x2xf32, #tpu.memory_space<vmem>>, %arg5: memref<1x16x1xf32, #tpu.memory_space<vmem>>, %arg6: memref<16x1xf32, #tpu.memory_space<vmem>>, %arg7: memref<16x1xf32, #tpu.memory_space<vmem>>) attributes {dimension_semantics = [#tpu.dimension_semantics<parallel>, #tpu.dimension_semantics<arbitrary>], iteration_bounds = array<i64: 2, 2>, scalar_prefetch = 0 : i64, scratch_operands = 2 : i64, tpu.core_type = #tpu.core_type<tc>, window_params = [{transform_indices = @transform_0, window_bounds = array<i64: 1, 16, 128>}, {pipeline_mode = #tpu.pipeline_mode<synchronous>, transform_indices = @transform_1, window_bounds = array<i64: 2, 16>}, {pipeline_mode = #tpu.pipeline_mode<synchronous>, transform_indices = @transform_2, window_bounds = array<i64: 16, 2>}, {transform_indices = @transform_3, window_bounds = array<i64: 1, 16, 1>}]} {
    %c0 = arith.constant 0 : index
    %c0_0 = arith.constant 0 : index
    %c0_1 = arith.constant 0 : index
    %0 = vector.load %arg2[%c0, %c0_0, %c0_1] : memref<1x16x128xf32, #tpu.memory_space<vmem>>, vector<1x16x128xf32>
    %1 = vector.shape_cast %0 : vector<1x16x128xf32> to vector<16x128xf32>
    %2 = tpu.iota {dimensions = array<i32: 1>} : vector<16x128xi32>
    %c128_i32 = arith.constant 128 : i32
    %3 = arith.muli %arg1, %c128_i32 : i32
    %4 = vector.broadcast %3 : i32 to vector<16x128xi32>
    %5 = arith.addi %4, %2 : vector<16x128xi32>
    %c169_i32 = arith.constant 169 : i32
    %6 = vector.broadcast %c169_i32 : i32 to vector<16x128xi32>
    %7 = arith.cmpi slt, %5, %6 : vector<16x128xi32>
    %cst = arith.constant 0.000000e+00 : f32
    %8 = vector.broadcast %cst : f32 to vector<16x128xf32>
    %9 = arith.select %7, %1, %8 : vector<16x128xi1>, vector<16x128xf32>
    %cst_2 = arith.constant 0xFF800000 : f32
    %10 = vector.broadcast %cst_2 : f32 to vector<16x128xf32>
    %11 = arith.select %7, %1, %10 : vector<16x128xi1>, vector<16x128xf32>
    %cst_3 = arith.constant dense<0.000000e+00> : vector<16xf32>
    %12 = vector.multi_reduction <add>, %9, %cst_3 [1] : vector<16x128xf32> to vector<16xf32>
    %13 = vector.shape_cast %12 : vector<16xf32> to vector<16x1xf32>
    %cst_4 = arith.constant dense<0xFF800000> : vector<16xf32>
    %14 = vector.multi_reduction <maximumf>, %11, %cst_4 [1] : vector<16x128xf32> to vector<16xf32>
    %15 = vector.shape_cast %14 : vector<16xf32> to vector<16x1xf32>
    %c0_i32 = arith.constant 0 : i32
    %16 = arith.cmpi eq, %arg1, %c0_i32 : i32
    %17 = arith.extui %16 : i1 to i32
    %c0_i32_5 = arith.constant 0 : i32
    %18 = arith.cmpi ne, %17, %c0_i32_5 : i32
    scf.if %18 {
      %c0_9 = arith.constant 0 : index
      %c0_10 = arith.constant 0 : index
      %25 = vector.load %arg6[%c0_9, %c0_10] : memref<16x1xf32, #tpu.memory_space<vmem>>, vector<16x1xf32>
      tpu.vector_store %arg6[%c0_9, %c0_10], %13 {strides = array<i32>} : memref<16x1xf32, #tpu.memory_space<vmem>>, vector<16x1xf32>,
      %c0_11 = arith.constant 0 : index
      %c0_12 = arith.constant 0 : index
      %26 = vector.load %arg7[%c0_11, %c0_12] : memref<16x1xf32, #tpu.memory_space<vmem>>, vector<16x1xf32>
      tpu.vector_store %arg7[%c0_11, %c0_12], %15 {strides = array<i32>} : memref<16x1xf32, #tpu.memory_space<vmem>>, vector<16x1xf32>,
    } else {
    }
    %c0_i32_6 = arith.constant 0 : i32
    %19 = arith.cmpi ne, %arg1, %c0_i32_6 : i32
    %20 = arith.extui %19 : i1 to i32
    %c0_i32_7 = arith.constant 0 : i32
    %21 = arith.cmpi ne, %20, %c0_i32_7 : i32
    scf.if %21 {
      %c0_9 = arith.constant 0 : index
      %c0_10 = arith.constant 0 : index
      %25 = vector.load %arg6[%c0_9, %c0_10] : memref<16x1xf32, #tpu.memory_space<vmem>>, vector<16x1xf32>
      %26 = arith.addf %25, %13 : vector<16x1xf32>
      %c0_11 = arith.constant 0 : index
      %c0_12 = arith.constant 0 : index
      %27 = vector.load %arg6[%c0_11, %c0_12] : memref<16x1xf32, #tpu.memory_space<vmem>>, vector<16x1xf32>
      tpu.vector_store %arg6[%c0_11, %c0_12], %26 {strides = array<i32>} : memref<16x1xf32, #tpu.memory_space<vmem>>, vector<16x1xf32>,
      %c0_13 = arith.constant 0 : index
      %c0_14 = arith.constant 0 : index
      %28 = vector.load %arg7[%c0_13, %c0_14] : memref<16x1xf32, #tpu.memory_space<vmem>>, vector<16x1xf32>
      %29 = arith.maximumf %28, %15 : vector<16x1xf32>
      %c0_15 = arith.constant 0 : index
      %c0_16 = arith.constant 0 : index
      %30 = vector.load %arg7[%c0_15, %c0_16] : memref<16x1xf32, #tpu.memory_space<vmem>>, vector<16x1xf32>
      tpu.vector_store %arg7[%c0_15, %c0_16], %29 {strides = array<i32>} : memref<16x1xf32, #tpu.memory_space<vmem>>, vector<16x1xf32>,
    } else {
    }
    %c1_i32 = arith.constant 1 : i32
    %22 = arith.cmpi eq, %arg1, %c1_i32 : i32
    %23 = arith.extui %22 : i1 to i32
    %c0_i32_8 = arith.constant 0 : i32
    %24 = arith.cmpi ne, %23, %c0_i32_8 : i32
    scf.if %24 {
      %c0_9 = arith.constant 0 : index
      %c0_10 = arith.constant 0 : index
      %25 = vector.load %arg6[%c0_9, %c0_10] : memref<16x1xf32, #tpu.memory_space<vmem>>, vector<16x1xf32>
      %cst_11 = arith.constant 5.917160e-03 : f32
      %26 = vector.broadcast %cst_11 : f32 to vector<16x1xf32>
      %27 = arith.mulf %25, %26 : vector<16x1xf32>
      %c0_12 = arith.constant 0 : index
      %c0_13 = arith.constant 0 : index
      %28 = vector.load %arg7[%c0_12, %c0_13] : memref<16x1xf32, #tpu.memory_space<vmem>>, vector<16x1xf32>
      %29 = tpu.concatenate %27, %28 in 1 : vector<16x1xf32>, vector<16x1xf32> -> vector<16x2xf32>
      %c0_14 = arith.constant 0 : index
      %c0_15 = arith.constant 0 : index
      %30 = vector.load %arg3[%c0_14, %c0_15] : memref<2x16xf32, #tpu.memory_space<vmem>>, vector<2x16xf32>
      %cst_16 = arith.constant dense<0.000000e+00> : vector<2x2xf32>
      %31 = tpu.matmul %30, %29, %cst_16 {dimension_numbers = #tpu.dot_dimension_numbers<[1], [0], [0], [1], [0, 0, 1, 1], [], []>} : vector<2x16xf32>, vector<16x2xf32>, vector<2x2xf32> -> vector<2x2xf32>
      %cst_17 = arith.constant 0.000000e+00 : f32
      %32 = vector.broadcast %cst_17 : f32 to vector<2x2xf32>
      %33 = arith.maximumf %31, %32 : vector<2x2xf32>
      %cst_18 = arith.constant dense<0.000000e+00> : vector<2xf32>
      %34 = vector.multi_reduction <add>, %33, %cst_18 [1] : vector<2x2xf32> to vector<2xf32>
      %35 = vector.shape_cast %34 : vector<2xf32> to vector<2x1xf32>
      %c0_19 = arith.constant 0 : index
      %c0_20 = arith.constant 0 : index
      %36 = vector.load %arg4[%c0_19, %c0_20] : memref<16x2xf32, #tpu.memory_space<vmem>>, vector<16x2xf32>
      %cst_21 = arith.constant dense<0.000000e+00> : vector<16x1xf32>
      %37 = tpu.matmul %36, %35, %cst_21 {dimension_numbers = #tpu.dot_dimension_numbers<[1], [0], [0], [1], [0, 0, 1, 1], [], []>} : vector<16x2xf32>, vector<2x1xf32>, vector<16x1xf32> -> vector<16x1xf32>
      %38 = arith.negf %37 : vector<16x1xf32>
      %39 = math.exp %38 : vector<16x1xf32>
      %cst_22 = arith.constant 1.000000e+00 : f32
      %40 = vector.broadcast %cst_22 : f32 to vector<16x1xf32>
      %41 = arith.addf %40, %39 : vector<16x1xf32>
      %42 = arith.divf %40, %41 : vector<16x1xf32>
      %c0_23 = arith.constant 0 : index
      %c0_24 = arith.constant 0 : index
      %c0_25 = arith.constant 0 : index
      %43 = vector.load %arg5[%c0_23, %c0_24, %c0_25] : memref<1x16x1xf32, #tpu.memory_space<vmem>>, vector<1x16x1xf32>
      %44 = vector.shape_cast %43 : vector<1x16x1xf32> to vector<16x1xf32>
      %45 = vector.shape_cast %42 : vector<16x1xf32> to vector<1x16x1xf32>
      tpu.vector_store %arg5[%c0_23, %c0_24, %c0_25], %45 {strides = array<i32>} : memref<1x16x1xf32, #tpu.memory_space<vmem>>, vector<1x16x1xf32>,
    } else {
    }
    return
  }
  func.func @transform_0(%arg0: i32, %arg1: i32) -> (i32, i32, i32) {
    %c0_i32 = arith.constant 0 : i32
    %c0_i32_0 = arith.constant 0 : i32
    return %arg0, %c0_i32, %arg1 : i32, i32, i32
  }
  func.func @transform_1(%arg0: i32, %arg1: i32) -> (i32, i32) {
    %c0_i32 = arith.constant 0 : i32
    %c0_i32_0 = arith.constant 0 : i32
    %c0_i32_1 = arith.constant 0 : i32
    return %c0_i32, %c0_i32_0 : i32, i32
  }
  func.func @transform_2(%arg0: i32, %arg1: i32) -> (i32, i32) {
    %c0_i32 = arith.constant 0 : i32
    %c0_i32_0 = arith.constant 0 : i32
    %c0_i32_1 = arith.constant 0 : i32
    return %c0_i32, %c0_i32_0 : i32, i32
  }
  func.func @transform_3(%arg0: i32, %arg1: i32) -> (i32, i32, i32) {
    %c0_i32 = arith.constant 0 : i32
    %c0_i32_0 = arith.constant 0 : i32
    %c0_i32_1 = arith.constant 0 : i32
    return %arg0, %c0_i32, %c0_i32_0 : i32, i32, i32
  }
}

</mosaic_0001>

<llo_original>
// kernel: tpu_custom_call.1
$region0: #{tpu_custom_call.1}
  #allocation0 [shape = 'u32[]', space=smem, size = 0x4, offset = 0x4, fixed_abs, tag = 'smem constant byte address 0x4 - core index']
  #allocation1 [shape = 'u32[144,128]{1,0:T(1,128)}', space=vmem, size = 0x12000, scoped, tag = 'internal scratch']
  #allocation2 [shape = 'f32[16,1]{1,0:T(8,128)}', space=vmem, size = 0x2000, scoped, tag = 'scratch operand']
  #allocation3 [shape = 'f32[16,1]{1,0:T(8,128)}', space=vmem, size = 0x2000, scoped, tag = 'scratch operand']
  %s0 = inlined_call_operand.hbm [shape: f32[2,16,169], index: 0, kind: input, shape index: {}]
  %s1 = inlined_call_operand.vmem [shape: f32[2,16], index: 1, kind: input, shape index: {}]
  %s2 = inlined_call_operand.vmem [shape: f32[16,2], index: 2, kind: input, shape index: {}]
  %s3 = inlined_call_operand.vmem [shape: f32[2,16,1], index: 3, kind: output, shape index: {}]
  %s4 = sld [smem:[#allocation0]]
  $region61: #{tpu_custom_call.1} parent=0
    _
  %s6 = ssub.s32 1, %s4
  %s7 = scalar_select 0, %s6, %s4
  $region1: #{tpu_custom_call.1} parent=0
    #allocation4 [shape = 'u8[16384]{0}', space=vmem, size = 0x4000, scoped, tag = 'input window, operand 0']
    #allocation5 [shape = 's32[2]{0}', space=sflag, size = 0x8, scoped, tag = 'scoped memory for tpu_custom_call.1']
    %8 = vsyncpa [#allocation5], 0
    %s9 = scalar_lea.sflag [#allocation5], 1
    %10 = vsyncpa %s9, 0
    loop: start=0, step=1, limit=6
    $region2: #{tpu_custom_call.1} parent=1 // loop_pre_header
      _
    $region3: #{tpu_custom_call.1} parent=1 // loop_header
      %s12 = sphi 0, %s16
      %p13 = scmp.ge.s32.totalorder %s12, 6
      %s19 = sphi 0, %s31
      %s20 = sphi 0, %s27
      %s21 = sphi 0, %s19
      %s22 = sphi 0, %s20
      %s23 = sphi 0, %s21
      %s24 = sphi 0, %s22
      %s36 = sphi 0, %s38
      %s39 = sphi 0, %s36
      %s40 = sphi 0, %s39
      %s56 = sphi 0, %s40
      %s60 = sphi 0, %s60
      %s62 = sphi 0, %s60
      %s63 = sphi 0, %s62
      %s77 = sphi 0, %s63
      %s81 = sphi 0, %s81
      %s83 = sphi 0, %s81
      %s84 = sphi 0, %s83
      %s98 = sphi 0, %s84
      %s104 = sphi 0, %s106
      %s107 = sphi 0, %s104
      %s108 = sphi 0, %s107
      %s124 = sphi 0, %s108
    $region4: #{tpu_custom_call.1} parent=1 // loop_header_branch
      %15 = sbr.rel (%p13) target = $region8
    $region5: #{tpu_custom_call.1} parent=1 // loop_body
      %s17 = ssub.s32 %s12, 1
      %s18 = ssub.s32 %s12, 2
      %s25 = sadd.s32 1, %s20
      %p26 = scmp.ge.s32.totalorder %s25, 2
      %s27 = scalar_select %p26, 0, %s25
      %s28 = sadd.s32 1, %s19
      %s29 = scalar_select %p26, %s28, %s19
      %p30 = scmp.ge.s32.totalorder %s29, 2
      %s31 = scalar_select %p30, 0, %s29
      %s32 = ssub.s32 %s19, %s31
      %s33 = ssub.s32 %s20, %s27
      %s34 = sor.u32 %s32, %s33
      %p35 = scmp.eq.s32.totalorder %s34, 0
      %s37 = sadd.s32 %s36, 1
      %s38 = scalar_select %p35, %s36, %s37
      %p41 = pneg %p35
      %p42 = scmp.eq.s32.totalorder %s12, 3
      %p43 = por %p41, %p42
      %p44 = scmp.ne.s32.totalorder %s36, %s39
      %p45 = scmp.eq.s32.totalorder %s12, 0
      %p46 = por %p44, %p45
      %p47 = scmp.ne.s32.totalorder %s36, %s39
      %p48 = scmp.eq.s32.totalorder %s17, 3
      %p49 = por %p47, %p48
      %p50 = scmp.ne.s32.totalorder %s39, %s40
      %p51 = scmp.eq.s32.totalorder %s17, 0
      %p52 = por %p50, %p51
      %p53 = scmp.ne.s32.totalorder %s39, %s40
      %p54 = scmp.eq.s32.totalorder %s18, 3
      %p55 = por %p53, %p54
      %p57 = scmp.ne.s32.totalorder %s40, %s56
      %p58 = scmp.eq.s32.totalorder %s18, 0
      %p59 = por %p57, %p58
      %s61 = sadd.s32 %s60, 1
      %p64 = scmp.eq.s32.totalorder %s12, 3
      %p65 = scmp.ne.s32.totalorder %s60, %s62
      %p66 = scmp.eq.s32.totalorder %s12, 0
      %p67 = por %p65, %p66
      %p68 = scmp.ne.s32.totalorder %s60, %s62
      %p69 = scmp.eq.s32.totalorder %s17, 3
      %p70 = por %p68, %p69
      %p71 = scmp.ne.s32.totalorder %s62, %s63
      %p72 = scmp.eq.s32.totalorder %s17, 0
      %p73 = por %p71, %p72
      %p74 = scmp.ne.s32.totalorder %s62, %s63
      %p75 = scmp.eq.s32.totalorder %s18, 3
      %p76 = por %p74, %p75
      %p78 = scmp.ne.s32.totalorder %s63, %s77
      %p79 = scmp.eq.s32.totalorder %s18, 0
      %p80 = por %p78, %p79
      %s82 = sadd.s32 %s81, 1
      %p85 = scmp.eq.s32.totalorder %s12, 3
      %p86 = scmp.ne.s32.totalorder %s81, %s83
      %p87 = scmp.eq.s32.totalorder %s12, 0
      %p88 = por %p86, %p87
      %p89 = scmp.ne.s32.totalorder %s81, %s83
      %p90 = scmp.eq.s32.totalorder %s17, 3
      %p91 = por %p89, %p90
      %p92 = scmp.ne.s32.totalorder %s83, %s84
      %p93 = scmp.eq.s32.totalorder %s17, 0
      %p94 = por %p92, %p93
      %p95 = scmp.ne.s32.totalorder %s83, %s84
      %p96 = scmp.eq.s32.totalorder %s18, 3
      %p97 = por %p95, %p96
      %p99 = scmp.ne.s32.totalorder %s84, %s98
      %p100 = scmp.eq.s32.totalorder %s18, 0
      %p101 = por %p99, %p100
      %s102 = ssub.s32 %s19, %s31
      %p103 = scmp.eq.s32.totalorder %s102, 0
      %s105 = sadd.s32 %s104, 1
      %s106 = scalar_select %p103, %s104, %s105
      %p109 = pneg %p103
      %p110 = scmp.eq.s32.totalorder %s12, 3
      %p111 = por %p109, %p110
      %p112 = scmp.ne.s32.totalorder %s104, %s107
      %p113 = scmp.eq.s32.totalorder %s12, 0
      %p114 = por %p112, %p113
      %p115 = scmp.ne.s32.totalorder %s104, %s107
      %p116 = scmp.eq.s32.totalorder %s17, 3
      %p117 = por %p115, %p116
      %p118 = scmp.ne.s32.totalorder %s107, %s108
      %p119 = scmp.eq.s32.totalorder %s17, 0
      %p120 = por %p118, %p119
      %p121 = scmp.ne.s32.totalorder %s107, %s108
      %p122 = scmp.eq.s32.totalorder %s18, 3
      %p123 = por %p121, %p122
      %p125 = scmp.ne.s32.totalorder %s108, %s124
      %p126 = scmp.eq.s32.totalorder %s18, 0
      %p127 = por %p125, %p126
      %p128 = scmp.le.s32.totalorder 1, %s12
      %p129 = scmp.lt.s32.totalorder %s12, 5
      %p130 = pnand %p128, %p129
      %p131 = pneg %p130
      // Predicated region
      $region9: #{tpu_custom_call.1} parent=5 // pred_check
        _
      $region10: #{tpu_custom_call.1} parent=5 // pred_check_branch
        %133 = sbr.rel (%p130) target = $region12
      $region11: #{tpu_custom_call.1} parent=5 // pred_region
        %s134 = ssub.s32 %s12, 1
        // Predicated region
        $region13: #{tpu_custom_call.1} parent=11 // pred_check
          %p135 = pneg %p73
        $region14: #{tpu_custom_call.1} parent=11 // pred_check_branch
          %137 = sbr.rel (%p135) target = $region16
        $region15: #{tpu_custom_call.1} parent=11 // pred_region
          _
        $region16: #{tpu_custom_call.1} parent=11 // pred_fallthru
          _
        // Predicated region
        $region17: #{tpu_custom_call.1} parent=11 // pred_check
          %p138 = pneg %p94
        $region18: #{tpu_custom_call.1} parent=11 // pred_check_branch
          %140 = sbr.rel (%p138) target = $region20
        $region19: #{tpu_custom_call.1} parent=11 // pred_region
          _
        $region20: #{tpu_custom_call.1} parent=11 // pred_fallthru
          _
      $region12: #{tpu_custom_call.1} parent=5 // pred_fallthru
        _
      %p141 = scmp.lt.s32.totalorder %s12, 4
      // Predicated region
      $region21: #{tpu_custom_call.1} parent=5 // pred_check
        %p142 = pneg %p141
      $region22: #{tpu_custom_call.1} parent=5 // pred_check_branch
        %144 = sbr.rel (%p142) target = $region24
      $region23: #{tpu_custom_call.1} parent=5 // pred_region
        // Predicated region
        $region25: #{tpu_custom_call.1} parent=23 // pred_check
          %p145 = pneg %p46
        $region26: #{tpu_custom_call.1} parent=23 // pred_check_branch
          %147 = sbr.rel (%p145) target = $region28
        $region27: #{tpu_custom_call.1} parent=23 // pred_region
          %s148 = sand.u32 %s36, 1
          %s149 = scalar_lea.sflag [#allocation5], %s148
          %s150 = sand.u32 %s36, 1
          %s151 = smul.addr %s150, 16
          %s152 = scalar_lea.vmem [#allocation4], %s151
          %s154 = ssub.s32 256, 256
          %155 = vsyncadd %s149, %s154
          %s156 = smul.addr %s19, 4
          %s157 = sadd.s32 %s20, %s156
          %s158 = smul.addr %s157, 128
          %s159 = scalar_lea.hbm %s0, %s158
          %s160 = sshll.u32 %s152, 4
          %s161 = int_to_ptr.vmem [resolvable:$true] %s160
          %166 = dma.hbm_to_vmem [thread:$0]  %s159, 256, %s161, %s149, 256, 128, 8
        $region28: #{tpu_custom_call.1} parent=23 // pred_fallthru
          _
      $region24: #{tpu_custom_call.1} parent=5 // pred_fallthru
        _
      %p167 = scmp.le.s32.totalorder 1, %s12
      %p168 = scmp.lt.s32.totalorder %s12, 5
      %p169 = pnand %p167, %p168
      %p170 = pneg %p169
      // Predicated region
      $region29: #{tpu_custom_call.1} parent=5 // pred_check
        _
      $region30: #{tpu_custom_call.1} parent=5 // pred_check_branch
        %172 = sbr.rel (%p169) target = $region32
      $region31: #{tpu_custom_call.1} parent=5 // pred_region
        %s173 = ssub.s32 %s12, 1
        %s174 = sand.u32 %s39, 1
        %s175 = scalar_lea.sflag [#allocation5], %s174
        %s176 = sand.u32 %s39, 1
        %s177 = smul.addr %s176, 16
        %s178 = scalar_lea.vmem [#allocation4], %s177
        // Predicated region
        $region33: #{tpu_custom_call.1} parent=31 // pred_check
          %p179 = pneg %p52
        $region34: #{tpu_custom_call.1} parent=31 // pred_check_branch
          %181 = sbr.rel (%p179) target = $region36
        $region35: #{tpu_custom_call.1} parent=31 // pred_region
          %182 = dma.done %s175, 256
        $region36: #{tpu_custom_call.1} parent=31 // pred_fallthru
          _
        %s183 = sand.u32 %s39, 1
        %s184 = scalar_lea.sflag [#allocation5], %s183
        %s185 = sand.u32 %s39, 1
        %s186 = smul.addr %s185, 16
        %s187 = scalar_lea.vmem [#allocation4], %s186
        %p188 = pneg %p52
        %p189 = pneg %p49
        %p190 = pneg %p73
        %p191 = pneg %p70
        %p192 = pneg %p94
        %p193 = pneg %p91
        %p194 = pneg %p120
        %p195 = pneg %p117
        %p196 = scmp.lt.s32.totalorder %s21, 1
        %s197 = scalar_select %p196, %s21, 1
        %s198 = smul.addr %s197, 2
        %s199 = smul.addr %s198, 8
        %s200 = scalar_lea.vmem %s3, %s199
        %p201 = scmp.lt.s32.totalorder %s21, 1
        %s202 = scalar_select %p201, %s21, 1
        %s203 = smul.addr %s202, 2
        %s204 = smul.addr %s203, 8
        %s205 = scalar_lea.vmem %s3, %s204
        %v206 = vld [vmem:[%s178] sm:$0xff]
        %v207 = vld [vmem:[%s178 + $0x8] sm:$0xff]
        %v208 = vlaneseq
        %v209 = vand.u32 %v208, 127
        %s210 = smul.u32 %s22, 128
        %v211 = vstv %s210
        %v212 = vadd.s32 %v211, %v209
        %vm213 = vcmp.lt.s32.totalorder %v212, 169
        %v214 = vsel %vm213, %v206, 0.0
        %v215 = vsel %vm213, %v207, 0.0
        %v216 = vsel %vm213, %v206, -inf
        %v217 = vsel %vm213, %v207, -inf
        %218 = vadd.xlane.f32.xlu0 %v214
        %v219 = vpop.xlane.xlu0 %218
        %220 = vadd.xlane.f32.xlu0 %v215
        %v221 = vpop.xlane.xlu0 %220
        %222 = vmax.xlane.f32.xlu0 %v216
        %v223 = vpop.xlane.xlu0 %222
        %224 = vmax.xlane.f32.xlu0 %v217
        %v225 = vpop.xlane.xlu0 %224
        %p226 = scmp.eq.s32.totalorder %s22, 0
        // Predicated region
        $region37: #{tpu_custom_call.1} parent=31 // pred_check
          %p227 = pneg %p226
        $region38: #{tpu_custom_call.1} parent=31 // pred_check_branch
          %229 = sbr.rel (%p227) target = $region40
        $region39: #{tpu_custom_call.1} parent=31 // pred_region
          %vm230 = vcmask 7168
          %231 = vst.msk [vmem:[#allocation2] sm:$0xff] %vm230, %v219
          %232 = vst.msk [vmem:[#allocation2 + $0x8] sm:$0xff] %vm230, %v221
          %233 = vst.msk [vmem:[#allocation3] sm:$0xff] %vm230, %v223
          %234 = vst.msk [vmem:[#allocation3 + $0x8] sm:$0xff] %vm230, %v225
        $region40: #{tpu_custom_call.1} parent=31 // pred_fallthru
          _
        %p235 = scmp.ne.s32.totalorder %s22, 0
        // Predicated region
        $region41: #{tpu_custom_call.1} parent=31 // pred_check
          %p236 = pneg %p235
        $region42: #{tpu_custom_call.1} parent=31 // pred_check_branch
          %238 = sbr.rel (%p236) target = $region44
        $region43: #{tpu_custom_call.1} parent=31 // pred_region
          %v239 = vld [vmem:[#allocation2] sm:$0xff]
          %v240 = vld [vmem:[#allocation2 + $0x8] sm:$0xff]
          %v241 = vadd.f32 %v239, %v219
          %v242 = vadd.f32 %v240, %v221
          %vm243 = vcmask 7168
          %244 = vst.msk [vmem:[#allocation2] sm:$0xff] %vm243, %v241
          %245 = vst.msk [vmem:[#allocation2 + $0x8] sm:$0xff] %vm243, %v242
          %v246 = vld [vmem:[#allocation3] sm:$0xff]
          %v247 = vld [vmem:[#allocation3 + $0x8] sm:$0xff]
          %v248 = vmax.f32 %v246, %v223
          %v249 = vmax.f32 %v247, %v225
          %250 = vst.msk [vmem:[#allocation3] sm:$0xff] %vm243, %v248
          %251 = vst.msk [vmem:[#allocation3 + $0x8] sm:$0xff] %vm243, %v249
        $region44: #{tpu_custom_call.1} parent=31 // pred_fallthru
          _
        %p252 = scmp.eq.s32.totalorder %s22, 1
        // Predicated region
        $region45: #{tpu_custom_call.1} parent=31 // pred_check
          %p253 = pneg %p252
        $region46: #{tpu_custom_call.1} parent=31 // pred_check_branch
          %255 = sbr.rel (%p253) target = $region48
        $region47: #{tpu_custom_call.1} parent=31 // pred_region
          %v256 = vld [vmem:[#allocation2] sm:$0xff]
          %v257 = vld [vmem:[#allocation2 + $0x8] sm:$0xff]
          %v258 = vmul.f32 %v256, 0.00591716
          %v259 = vmul.f32 %v257, 0.00591716
          %v260 = vld [vmem:[#allocation3] sm:$0xff]
          %v261 = vld [vmem:[#allocation3 + $0x8] sm:$0xff]
          %264 = vrot.lane.b32.xlu0 %v260, 1
          %v265 = vpop.permute.xlu0 %264
          %266 = vrot.lane.b32.xlu0 %v261, 1
          %v267 = vpop.permute.xlu0 %266
          %vm270 = vcmask 7168
          %v271 = vsel %vm270, %v258, %v265
          %v272 = vsel %vm270, %v259, %v267
          %v273 = vld [vmem:[%s1] sm:$0x3]
          %vm274 = vcmask 130048
          %v276 = vsel %vm274, %v273, 0
          %278 = vmatprep.subr.mxu0 0.0
          %279 = vmatpush1.msra.mxu0 %v271
          %280 = vmatprep.subr.mxu0 0.0
          %281 = vmatpush1.msra.mxu0 %v272
          %282 = vmatprep.subr.mxu0 0.0
          %283 = vmatpush1.msra.mxu0 0.0
          %284 = vmatprep.subr.mxu0 0.0
          %285 = vmatpush1.msra.mxu0 0.0
          %286 = vmatprep.subr.mxu0 0.0
          %287 = vmatpush1.msra.mxu0 0.0
          %288 = vmatprep.subr.mxu0 0.0
          %289 = vmatpush1.msra.mxu0 0.0
          %290 = vmatprep.subr.mxu0 0.0
          %291 = vmatpush1.msra.mxu0 0.0
          %292 = vmatprep.subr.mxu0 0.0
          %293 = vmatpush1.msra.mxu0 0.0
          %294 = vmatprep.subr.mxu0 0.0
          %295 = vmatpush1.msra.mxu0 0.0
          %296 = vmatprep.subr.mxu0 0.0
          %297 = vmatpush1.msra.mxu0 0.0
          %298 = vmatprep.subr.mxu0 0.0
          %299 = vmatpush1.msra.mxu0 0.0
          %300 = vmatprep.subr.mxu0 0.0
          %301 = vmatpush1.msra.mxu0 0.0
          %302 = vmatprep.subr.mxu0 0.0
          %303 = vmatpush1.msra.mxu0 0.0
          %304 = vmatprep.subr.mxu0 0.0
          %305 = vmatpush1.msra.mxu0 0.0
          %306 = vmatprep.subr.mxu0 0.0
          %307 = vmatpush1.msra.mxu0 0.0
          %308 = vmatprep.subr.mxu0 0.0
          %309 = vmatpush1.msra.mxu0 0.0
          %310 = vmatprep.subr.mxu0 0.0
          %311 = vmatpush1.msra.mxu0 0.0
          %312 = vmatprep.subr.mxu0 0.0
          %313 = vmatpush1.msra.mxu0 0.0
          %314 = vmatprep.subr.mxu0 0.0
          %315 = vmatpush1.msra.mxu0 0.0
          %316 = vmatprep.subr.mxu0 0.0
          %317 = vmatpush1.msra.mxu0 0.0
          %318 = vmatprep.subr.mxu0 0.0
          %319 = vmatpush1.msra.mxu0 0.0
          %320 = vmatprep.subr.mxu0 0.0
          %321 = vmatpush1.msra.mxu0 0.0
          %322 = vmatprep.subr.mxu0 0.0
          %323 = vmatpush1.msra.mxu0 0.0
          %324 = vmatprep.subr.mxu0 0.0
          %325 = vmatpush1.msra.mxu0 0.0
          %326 = vmatprep.subr.mxu0 0.0
          %327 = vmatpush1.msra.mxu0 0.0
          %328 = vmatprep.subr.mxu0 0.0
          %329 = vmatpush1.msra.mxu0 0.0
          %330 = vmatprep.subr.mxu0 0.0
          %331 = vmatpush1.msra.mxu0 0.0
          %332 = vmatprep.subr.mxu0 0.0
          %333 = vmatpush1.msra.mxu0 0.0
          %334 = vmatprep.subr.mxu0 0.0
          %335 = vmatpush1.msra.mxu0 0.0
          %336 = vmatprep.subr.mxu0 0.0
          %337 = vmatpush1.msra.mxu0 0.0
          %338 = vmatprep.subr.mxu0 0.0
          %339 = vmatpush1.msra.mxu0 0.0
          %340 = vmatprep.subr.mxu0 0.0
          %341 = vmatpush1.msra.mxu0 0.0
          %342 = vmatprep.mubr.f32.mxu0 0.0
          %343 = vmatmul.mubr.f32.gmra.mrb[0].mxu0 %v276
          %v344 = vpop.f32.mrb[0].mxu0
          %v345 = vadd.f32 0.0, %v344
          %v346 = vpop.f32.mrb[0].mxu0
          %347 = vdwg.mxu0
          %v348 = vmax.f32 %v345, 0.0
          %vm349 = vcmask 9216
          %v350 = vsel %vm349, %v348, 0.0
          %351 = vadd.xlane.f32.xlu0 %v350
          %v352 = vpop.xlane.xlu0 %351
          %v353 = vld [vmem:[%s2] sm:$0xff]
          %v354 = vld [vmem:[%s2 + $0x8] sm:$0xff]
          %vm355 = vcmask 15360
          %v357 = vsel %vm355, %v353, 0
          %v360 = vsel %vm355, %v354, 0
          %vm362 = vcmask 1041408
          %v364 = vsel %vm362, %v352, 0
          %366 = vmatprep.subr.mxu0 0.0
          %367 = vmatpush1.msra.mxu0 %v364
          %368 = vmatprep.subr.mxu0 0.0
          %369 = vmatpush1.msra.mxu0 0.0
          %370 = vmatprep.subr.mxu0 0.0
          %371 = vmatpush1.msra.mxu0 0.0
          %372 = vmatprep.subr.mxu0 0.0
          %373 = vmatpush1.msra.mxu0 0.0
          %374 = vmatprep.subr.mxu0 0.0
          %375 = vmatpush1.msra.mxu0 0.0
          %376 = vmatprep.subr.mxu0 0.0
          %377 = vmatpush1.msra.mxu0 0.0
          %378 = vmatprep.subr.mxu0 0.0
          %379 = vmatpush1.msra.mxu0 0.0
          %380 = vmatprep.subr.mxu0 0.0
          %381 = vmatpush1.msra.mxu0 0.0
          %382 = vmatprep.subr.mxu0 0.0
          %383 = vmatpush1.msra.mxu0 0.0
          %384 = vmatprep.subr.mxu0 0.0
          %385 = vmatpush1.msra.mxu0 0.0
          %386 = vmatprep.subr.mxu0 0.0
          %387 = vmatpush1.msra.mxu0 0.0
          %388 = vmatprep.subr.mxu0 0.0
          %389 = vmatpush1.msra.mxu0 0.0
          %390 = vmatprep.subr.mxu0 0.0
          %391 = vmatpush1.msra.mxu0 0.0
          %392 = vmatprep.subr.mxu0 0.0
          %393 = vmatpush1.msra.mxu0 0.0
          %394 = vmatprep.subr.mxu0 0.0
          %395 = vmatpush1.msra.mxu0 0.0
          %396 = vmatprep.subr.mxu0 0.0
          %397 = vmatpush1.msra.mxu0 0.0
          %398 = vmatprep.subr.mxu0 0.0
          %399 = vmatpush1.msra.mxu0 0.0
          %400 = vmatprep.subr.mxu0 0.0
          %401 = vmatpush1.msra.mxu0 0.0
          %402 = vmatprep.subr.mxu0 0.0
          %403 = vmatpush1.msra.mxu0 0.0
          %404 = vmatprep.subr.mxu0 0.0
          %405 = vmatpush1.msra.mxu0 0.0
          %406 = vmatprep.subr.mxu0 0.0
          %407 = vmatpush1.msra.mxu0 0.0
          %408 = vmatprep.subr.mxu0 0.0
          %409 = vmatpush1.msra.mxu0 0.0
          %410 = vmatprep.subr.mxu0 0.0
          %411 = vmatpush1.msra.mxu0 0.0
          %412 = vmatprep.subr.mxu0 0.0
          %413 = vmatpush1.msra.mxu0 0.0
          %414 = vmatprep.subr.mxu0 0.0
          %415 = vmatpush1.msra.mxu0 0.0
          %416 = vmatprep.subr.mxu0 0.0
          %417 = vmatpush1.msra.mxu0 0.0
          %418 = vmatprep.subr.mxu0 0.0
          %419 = vmatpush1.msra.mxu0 0.0
          %420 = vmatprep.subr.mxu0 0.0
          %421 = vmatpush1.msra.mxu0 0.0
          %422 = vmatprep.subr.mxu0 0.0
          %423 = vmatpush1.msra.mxu0 0.0
          %424 = vmatprep.subr.mxu0 0.0
          %425 = vmatpush1.msra.mxu0 0.0
          %426 = vmatprep.subr.mxu0 0.0
          %427 = vmatpush1.msra.mxu0 0.0
          %428 = vmatprep.subr.mxu0 0.0
          %429 = vmatpush1.msra.mxu0 0.0
          %430 = vmatprep.mubr.f32.mxu0 0.0
          %431 = vmatmul.mubr.f32.gmra.mrb[0].mxu0 %v357
          %v432 = vpop.f32.mrb[0].mxu0
          %v433 = vadd.f32 0.0, %v432
          %v434 = vpop.f32.mrb[0].mxu0
          %435 = vmatprep.mubr.f32.mxu0 0.0
          %436 = vmatmul.mubr.f32.gmra.mrb[0].mxu0 %v360
          %v437 = vpop.f32.mrb[0].mxu0
          %v438 = vadd.f32 0.0, %v437
          %v439 = vpop.f32.mrb[0].mxu0
          %440 = vdwg.mxu0
          %v441 = vxor.u32 %v433, 2147483648
          %v442 = vxor.u32 %v438, 2147483648
          %v443 = vmul.f32 %v441, 1.442695
          %v444 = vpow.pop %v443
          %v445 = vmul.f32 %v442, 1.442695
          %v446 = vpow.pop %v445
          %v447 = vadd.f32 %v444, 1.0
          %v448 = vadd.f32 %v446, 1.0
          %v449 = vrcp.pop %v447
          %v450 = vmul.f32 1.0, %v449
          %v451 = vrcp.pop %v448
          %v452 = vmul.f32 1.0, %v451
          %453 = vst.msk [vmem:[%s205] sm:$0xff] %vm270, %v450
          %454 = vst.msk [vmem:[%s205 + $0x8] sm:$0xff] %vm270, %v452
        $region48: #{tpu_custom_call.1} parent=31 // pred_fallthru
          _
        %p455 = scmp.lt.s32.totalorder %s21, 1
        %s456 = scalar_select %p455, %s21, 1
        %s457 = smul.addr %s456, 2
        %s458 = smul.addr %s457, 8
        %s459 = scalar_lea.vmem %s3, %s458
        // Predicated region
        $region49: #{tpu_custom_call.1} parent=31 // pred_check
          %p460 = pneg %p117
        $region50: #{tpu_custom_call.1} parent=31 // pred_check_branch
          %462 = sbr.rel (%p460) target = $region52
        $region51: #{tpu_custom_call.1} parent=31 // pred_region
          _
        $region52: #{tpu_custom_call.1} parent=31 // pred_fallthru
          _
      $region32: #{tpu_custom_call.1} parent=5 // pred_fallthru
        _
      %p463 = scmp.le.s32.totalorder 2, %s12
      // Predicated region
      $region53: #{tpu_custom_call.1} parent=5 // pred_check
        %p464 = pneg %p463
      $region54: #{tpu_custom_call.1} parent=5 // pred_check_branch
        %466 = sbr.rel (%p464) target = $region56
      $region55: #{tpu_custom_call.1} parent=5 // pred_region
        %s467 = ssub.s32 %s12, 2
        // Predicated region
        $region57: #{tpu_custom_call.1} parent=55 // pred_check
          %p468 = pneg %p123
        $region58: #{tpu_custom_call.1} parent=55 // pred_check_branch
          %470 = sbr.rel (%p468) target = $region60
        $region59: #{tpu_custom_call.1} parent=55 // pred_region
          %p471 = scmp.lt.s32.totalorder %s23, 1
          %s472 = scalar_select %p471, %s23, 1
          %s473 = smul.addr %s472, 2
          %s474 = smul.addr %s473, 8
          %s475 = scalar_lea.vmem %s3, %s474
        $region60: #{tpu_custom_call.1} parent=55 // pred_fallthru
          _
      $region56: #{tpu_custom_call.1} parent=5 // pred_fallthru
        _
    $region6: #{tpu_custom_call.1} parent=1 // loop_footer
      %s16 = sadd.s32 1, %s12
    $region7: #{tpu_custom_call.1} parent=1 // loop_footer_branch
      %11 = sbr.rel target = $region3
    $region8: #{tpu_custom_call.1} parent=1 // loop_exit
      _
    %476 = vsyncpa [#allocation5], 1
    %s477 = scalar_lea.sflag [#allocation5], 1
    %478 = vsyncpa %s477, 1

</llo_original>
